<compile_context>
chip_gen: v7x
topology: tpu7x:2x2x1
jax: 0.10.0
libtpu: 0.0.40
codegen_flags: <defaults>
</compile_context>

<pallas_src>
import functools

import jax
import jax.numpy as jnp
from jax.experimental import pallas as pl
from jax.experimental.pallas import tpu as pltpu


def _round_up(x, m):
    return -(-x // m) * m


def _pnn_kernel(mode, n_sparse, embed_dim, pairs,
                e_ref, dense_ref,
                wz_ref, wpair_ref, w1d_ref, w1p_ref, w2_ref, bias_ref,
                out_ref, s_ref):
    """One batch tile. Activations are flipped to (features, TB); batch on lanes."""
    f32 = jnp.float32
    H0 = wz_ref.shape[0]
    H1 = w1p_ref.shape[0]
    H2 = w2_ref.shape[0]

    # ---- in-kernel transpose (XLU, idle slot) to feature-major, lane-dense ----
    E = jnp.transpose(e_ref[...].astype(f32), (1, 0))            # (FD_p, TB)
    dense_t = jnp.transpose(dense_ref[...].astype(f32), (1, 0))  # (ND_p, TB)

    # ---- l_z^T = Wz(H0, FD_p) @ E : single MXU contraction ----
    lz = jnp.dot(wz_ref[...], E, preferred_element_type=f32)     # (H0, TB)

    # ---- product term: pair sums -> VMEM scratch -> one MXU combine ----
    if mode == "inner":
        src, blk = E, embed_dim                                   # pairs over features
    else:
        # outer: src = sum_f E_f -> (D, TB); pairs over embedding dims
        src = E[0:embed_dim, :]
        for f in range(1, n_sparse):
            src = src + E[f * embed_dim:(f + 1) * embed_dim, :]
        blk = 1

    for k, (a, b) in enumerate(pairs):
        prod = src[a * blk:(a + 1) * blk, :] * src[b * blk:(b + 1) * blk, :]
        s_ab = jnp.sum(prod, axis=0, keepdims=True) if blk > 1 else prod   # (1, TB)
        s_ref[k:k + 1, :] = s_ab
    lp = jnp.dot(wpair_ref[...], s_ref[...], preferred_element_type=f32)   # (H0, TB)

    # ---- unpack the packed bias / small-vector slab (static sublane slices) ----
    o = 0
    bprod = bias_ref[o:o + H0, :]; o += H0       # bz + bp + l_b  (pre-folded)
    b1 = bias_ref[o:o + H1, :]; o += H1
    b2 = bias_ref[o:o + H2, :]; o += H2
    wf = bias_ref[o:o + H2, :]; o += H2
    bf = bias_ref[o:o + 1, :]

    prod_act = jnp.maximum(lz + lp + bprod, 0.0)                  # relu(prod)   (H0, TB)
    dense_act = jnp.maximum(dense_t, 0.0)                         # relu(dense)  (ND_p, TB)

    # ---- relu(cat([dense, prod])) @ W1 + b1, concat folded into split W1 ----
    h = (jnp.dot(w1d_ref[...], dense_act, preferred_element_type=f32)
         + jnp.dot(w1p_ref[...], prod_act, preferred_element_type=f32)
         + b1)
    h = jnp.maximum(h, 0.0)                                       # (H1, TB)

    # ---- second DNN layer ----
    # TODO(synk): DNN class is not given in the source; assumed the standard
    # Linear->ReLU stack over hidden_units with Dropout (identity at inference).
    h = jnp.maximum(jnp.dot(w2_ref[...], h, preferred_element_type=f32) + b2, 0.0)

    # ---- final linear (H2 -> 1) as a sublane reduction + sigmoid (EUP recip) ----
    logit = jnp.sum(wf * h, axis=0, keepdims=True) + bf           # (1, TB)
    sig = pl.reciprocal(1.0 + jnp.exp(-logit), approx=True)
    out_ref[...] = sig.astype(out_ref.dtype)


def pnn_forward(dense_input, sparse_embeds, params, mode="inner",
                block_batch=4096, data_dtype=jnp.bfloat16):
    """dense_input: (B, n_dense); sparse_embeds: (B, F, D) stacked embeddings."""
    B, n_dense = dense_input.shape
    _, F, D = sparse_embeds.shape
    FD = F * D

    # ---- batch tile: 128-aligned, >= 2 grid steps when possible (v7x megacore) ----
    b_round = _round_up(B, 128)
    tb = max(128, (min(block_batch, b_round) // 128) * 128)
    if b_round // tb < 2 and tb >= 256:
        tb = max(128, (tb // 256) * 128)          # halve -> at least 2 pipelined steps
    n_blocks = -(-B // tb)
    b_pad = n_blocks * tb

    # ---- feature-dim padding so in-kernel transposes stay (8, 128)-friendly ----
    fd_p = _round_up(FD, 8)
    nd_p = _round_up(max(n_dense, 1), 8)

    def _pad(x, rows, cols):
        if rows or cols:
            x = jnp.pad(x, ((0, rows), (0, cols)))
        return x

    # Data stays batch-major: the (B, F, D) -> (B, FD) reshape is contiguous (no copy)
    # and no HBM transpose is materialized; padded rows/cols are zeros (harmless).
    e_bm = _pad(sparse_embeds.reshape(B, FD).astype(data_dtype), b_pad - B, fd_p - FD)
    dense_bm = _pad(dense_input.astype(data_dtype), b_pad - B, nd_p - n_dense)

    # ---- weights to (out, in), f32, resident in VMEM (constant index_maps) ----
    wz_t = _pad(params["wz"].T.astype(jnp.float32), 0, fd_p - FD)          # (H0, FD_p)
    w1d_t = _pad(params["w1"][:n_dense, :].T.astype(jnp.float32), 0, nd_p - n_dense)
    w1p_t = params["w1"][n_dense:, :].T.astype(jnp.float32)                # (H1, H0)
    w2_t = params["w2"].T.astype(jnp.float32)                              # (H2, H1)

    # product-layer + DNN biases / final weight packed into one (.., 1) slab
    bprod = (params["bz"] + params["bp"] + params["lb"]).T                 # (H0, 1)
    bias_slab = jnp.concatenate(
        [bprod, params["b1"].T, params["b2"].T, params["wf"], params["bf"]],
        axis=0).astype(jnp.float32)                                        # (H0+H1+2*H2+1, 1)

    # symmetric-pair folding of the product weight (p is symmetric in both modes)
    n_blk = F if mode == "inner" else D
    wp_t = params["wp"].T                                                  # (H0, n_blk*n_blk)
    pairs = tuple((a, b) for a in range(n_blk) for b in range(a, n_blk))
    cols = []
    for a, b in pairs:
        c = wp_t[:, a * n_blk + b]
        if a != b:
            c = c + wp_t[:, b * n_blk + a]
        cols.append(c)
    wpair = jnp.stack(cols, axis=1).astype(jnp.float32)                    # (H0, n_pairs)
    n_pairs = len(pairs)

    weights = (wz_t, wpair, w1d_t, w1p_t, w2_t, bias_slab)

    grid = (n_blocks,)
    in_specs = [
        pl.BlockSpec((tb, fd_p), lambda i: (i, 0)),       # E  (batch-major block)
        pl.BlockSpec((tb, nd_p), lambda i: (i, 0)),       # dense
    ] + [pl.BlockSpec(w.shape, lambda i: (0, 0)) for w in weights]   # DMA'd once

    out = pl.pallas_call(
        functools.partial(_pnn_kernel, mode, F, D, pairs),
        out_shape=jax.ShapeDtypeStruct((1, b_pad), jnp.float32),
        grid=grid,
        in_specs=in_specs,
        out_specs=pl.BlockSpec((1, tb), lambda i: (0, i)),
        scratch_shapes=[pltpu.VMEM((n_pairs, tb), jnp.float32)],
        compiler_params=pltpu.CompilerParams(dimension_semantics=("parallel",)),
    )(e_bm, dense_bm, *weights)
    return out[0, :B]                                            # (B,)  == .squeeze()


def pnn_reference(dense_input, E, params, mode="inner"):
    """Pure-JAX reference mirroring the PyTorch forward exactly."""
    B, F, D = E.shape
    z = E.reshape(B, F * D)
    l_z = z @ params["wz"] + params["bz"]
    if mode == "inner":
        p = jnp.einsum('bfd,bgd->bfg', E, E)
    else:
        s = E.sum(axis=1)
        p = s[:, :, None] * s[:, None, :]
    l_p = p.reshape(B, -1) @ params["wp"] + params["bp"]
    prod = l_z + l_p + params["lb"]
    x = jax.nn.relu(jnp.concatenate([dense_input, prod], axis=1))
    x = jax.nn.relu(x @ params["w1"] + params["b1"])
    x = jax.nn.relu(x @ params["w2"] + params["b2"])
    return jax.nn.sigmoid(x @ params["wf"] + params["bf"])[:, 0]


if __name__ == "__main__":
    key = jax.random.PRNGKey(0)
    keys = jax.random.split(key, 32)

    # Small shapes consistent with the module.
    B, F, D, n_dense = 256, 4, 8, 3        # batch, n_sparse_feats, embed_dim, n_dense_feats
    hidden_units = [32, 16, 8]             # as passed to PNN.__init__ (before += n_dense)
    H0, H1, H2 = hidden_units
    feat_nums = [10, 20, 30, 15]

    # Deterministic synthetic parameters (stored as (in, out), i.e. torch weight^T).
    embed_tables = [0.1 * jax.random.normal(keys[i], (feat_nums[i], D), jnp.float32)
                    for i in range(F)]

    def make_params(mode):
        p_in = F * F if mode == "inner" else D * D
        params = dict(
            wz=0.1 * jax.random.normal(keys[4], (F * D, H0)),
            bz=0.1 * jax.random.normal(keys[5], (1, H0)),
            wp=0.1 * jax.random.normal(keys[6], (p_in, H0)),
            bp=0.1 * jax.random.normal(keys[7], (1, H0)),
            lb=jax.random.uniform(keys[8], (1, H0)),                   # torch.rand
            w1=0.1 * jax.random.normal(keys[9], (n_dense + H0, H1)),   # hidden_units[0] += n_dense
            b1=0.1 * jax.random.normal(keys[10], (1, H1)),
            w2=0.1 * jax.random.normal(keys[11], (H1, H2)),
            b2=0.1 * jax.random.normal(keys[12], (1, H2)),
            wf=0.1 * jax.random.normal(keys[13], (H2, 1)),
            bf=0.1 * jax.random.normal(keys[14], (1, 1)),
        )
        return {k: v.astype(jnp.float32) for k, v in params.items()}

    # Deterministic inputs.
    dense_input = jax.random.normal(keys[15], (B, n_dense), jnp.float32)
    sparse_input = jnp.stack(
        [jax.random.randint(keys[16 + i], (B,), 0, feat_nums[i]) for i in range(F)],
        axis=1)                                                    # (B, F) int32

    # Embedding gather (glue, plain JAX) -> stacked embeddings (B, F, D).
    E = jnp.stack([embed_tables[i][sparse_input[:, i]] for i in range(F)], axis=1)

    # f32 parity check (tolerance covers only the EUP approx reciprocal in the sigmoid),
    # bf16 data path (production default), and outer-product mode coverage.
    checks = (("inner", jnp.float32, 5e-3),
              ("inner", jnp.bfloat16, 5e-2),
              ("outer", jnp.float32, 5e-3))
    for mode, dtype, tol in checks:
        params = make_params(mode)
        out = jax.block_until_ready(
            pnn_forward(dense_input, E, params, mode=mode, data_dtype=dtype))
        ref = pnn_reference(dense_input, E, params, mode=mode)
        assert out.shape == (B,), out.shape
        if not jnp.allclose(out, ref, atol=tol, rtol=tol):
            max_err = jnp.max(jnp.abs(out - ref))
            raise AssertionError(
                f"Pallas output mismatch (mode={mode}, dtype={dtype}): max abs err = {max_err}")
    print("KERNEL_OK")
</pallas_src>

<mosaic_0001>
module attributes {stable_mosaic.version = 11 : i64} {
  func.func @_pnn_kernel(%arg0: i32, %arg1: memref<128x32xf32, #tpu.memory_space<vmem>>, %arg2: memref<128x8xf32, #tpu.memory_space<vmem>>, %arg3: memref<32x32xf32, #tpu.memory_space<vmem>>, %arg4: memref<32x10xf32, #tpu.memory_space<vmem>>, %arg5: memref<16x8xf32, #tpu.memory_space<vmem>>, %arg6: memref<16x32xf32, #tpu.memory_space<vmem>>, %arg7: memref<8x16xf32, #tpu.memory_space<vmem>>, %arg8: memref<65x1xf32, #tpu.memory_space<vmem>>, %arg9: memref<1x128xf32, #tpu.memory_space<vmem>>, %arg10: memref<10x128xf32, #tpu.memory_space<vmem>>) attributes {dimension_semantics = [#tpu.dimension_semantics<parallel>], iteration_bounds = array<i64: 2>, scalar_prefetch = 0 : i64, scratch_operands = 1 : i64, tpu.core_type = #tpu.core_type<tc>, window_params = [{transform_indices = @transform_0, window_bounds = array<i64: 128, 32>}, {transform_indices = @transform_1, window_bounds = array<i64: 128, 8>}, {pipeline_mode = #tpu.pipeline_mode<synchronous>, transform_indices = @transform_2, window_bounds = array<i64: 32, 32>}, {pipeline_mode = #tpu.pipeline_mode<synchronous>, transform_indices = @transform_3, window_bounds = array<i64: 32, 10>}, {pipeline_mode = #tpu.pipeline_mode<synchronous>, transform_indices = @transform_4, window_bounds = array<i64: 16, 8>}, {pipeline_mode = #tpu.pipeline_mode<synchronous>, transform_indices = @transform_5, window_bounds = array<i64: 16, 32>}, {pipeline_mode = #tpu.pipeline_mode<synchronous>, transform_indices = @transform_6, window_bounds = array<i64: 8, 16>}, {pipeline_mode = #tpu.pipeline_mode<synchronous>, transform_indices = @transform_7, window_bounds = array<i64: 65, 1>}, {transform_indices = @transform_8, window_bounds = array<i64: 1, 128>}]} {
    %c0 = arith.constant 0 : index
    %c0_0 = arith.constant 0 : index
    %0 = vector.load %arg1[%c0, %c0_0] : memref<128x32xf32, #tpu.memory_space<vmem>>, vector<128x32xf32>
    %1 = tpu.transpose %0, [1, 0] : vector<128x32xf32> -> vector<32x128xf32>
    %c0_1 = arith.constant 0 : index
    %c0_2 = arith.constant 0 : index
    %2 = vector.load %arg2[%c0_1, %c0_2] : memref<128x8xf32, #tpu.memory_space<vmem>>, vector<128x8xf32>
    %3 = tpu.transpose %2, [1, 0] : vector<128x8xf32> -> vector<8x128xf32>
    %c0_3 = arith.constant 0 : index
    %c0_4 = arith.constant 0 : index
    %4 = vector.load %arg3[%c0_3, %c0_4] : memref<32x32xf32, #tpu.memory_space<vmem>>, vector<32x32xf32>
    %cst = arith.constant dense<0.000000e+00> : vector<32x128xf32>
    %5 = tpu.matmul %4, %1, %cst {dimension_numbers = #tpu.dot_dimension_numbers<[1], [0], [0], [1], [0, 0, 1, 1], [], []>} : vector<32x32xf32>, vector<32x128xf32>, vector<32x128xf32> -> vector<32x128xf32>
    %6 = vector.extract_strided_slice %1 {offsets = [0, 0], sizes = [8, 128], strides = [1, 1]} : vector<32x128xf32> to vector<8x128xf32>
    %7 = vector.extract_strided_slice %1 {offsets = [0, 0], sizes = [8, 128], strides = [1, 1]} : vector<32x128xf32> to vector<8x128xf32>
    %8 = arith.mulf %6, %7 : vector<8x128xf32>
    %cst_5 = arith.constant dense<0.000000e+00> : vector<128xf32>
    %9 = vector.multi_reduction <add>, %8, %cst_5 [0] : vector<8x128xf32> to vector<128xf32>
    %10 = vector.shape_cast %9 : vector<128xf32> to vector<1x128xf32>
    %c0_6 = arith.constant 0 : index
    %c0_7 = arith.constant 0 : index
    %11 = vector.load %arg10[%c0_6, %c0_7] : memref<10x128xf32, #tpu.memory_space<vmem>>, vector<1x128xf32>
    tpu.vector_store %arg10[%c0_6, %c0_7], %10 {strides = array<i32>} : memref<10x128xf32, #tpu.memory_space<vmem>>, vector<1x128xf32>,
    %12 = vector.extract_strided_slice %1 {offsets = [0, 0], sizes = [8, 128], strides = [1, 1]} : vector<32x128xf32> to vector<8x128xf32>
    %13 = vector.extract_strided_slice %1 {offsets = [8, 0], sizes = [8, 128], strides = [1, 1]} : vector<32x128xf32> to vector<8x128xf32>
    %14 = arith.mulf %12, %13 : vector<8x128xf32>
    %cst_8 = arith.constant dense<0.000000e+00> : vector<128xf32>
    %15 = vector.multi_reduction <add>, %14, %cst_8 [0] : vector<8x128xf32> to vector<128xf32>
    %16 = vector.shape_cast %15 : vector<128xf32> to vector<1x128xf32>
    %c1 = arith.constant 1 : index
    %c0_9 = arith.constant 0 : index
    %17 = vector.load %arg10[%c1, %c0_9] : memref<10x128xf32, #tpu.memory_space<vmem>>, vector<1x128xf32>
    tpu.vector_store %arg10[%c1, %c0_9], %16 {strides = array<i32>} : memref<10x128xf32, #tpu.memory_space<vmem>>, vector<1x128xf32>,
    %18 = vector.extract_strided_slice %1 {offsets = [0, 0], sizes = [8, 128], strides = [1, 1]} : vector<32x128xf32> to vector<8x128xf32>
    %19 = vector.extract_strided_slice %1 {offsets = [16, 0], sizes = [8, 128], strides = [1, 1]} : vector<32x128xf32> to vector<8x128xf32>
    %20 = arith.mulf %18, %19 : vector<8x128xf32>
    %cst_10 = arith.constant dense<0.000000e+00> : vector<128xf32>
    %21 = vector.multi_reduction <add>, %20, %cst_10 [0] : vector<8x128xf32> to vector<128xf32>
    %22 = vector.shape_cast %21 : vector<128xf32> to vector<1x128xf32>
    %c2 = arith.constant 2 : index
    %c0_11 = arith.constant 0 : index
    %23 = vector.load %arg10[%c2, %c0_11] : memref<10x128xf32, #tpu.memory_space<vmem>>, vector<1x128xf32>
    tpu.vector_store %arg10[%c2, %c0_11], %22 {strides = array<i32>} : memref<10x128xf32, #tpu.memory_space<vmem>>, vector<1x128xf32>,
    %24 = vector.extract_strided_slice %1 {offsets = [0, 0], sizes = [8, 128], strides = [1, 1]} : vector<32x128xf32> to vector<8x128xf32>
    %25 = vector.extract_strided_slice %1 {offsets = [24, 0], sizes = [8, 128], strides = [1, 1]} : vector<32x128xf32> to vector<8x128xf32>
    %26 = arith.mulf %24, %25 : vector<8x128xf32>
    %cst_12 = arith.constant dense<0.000000e+00> : vector<128xf32>
    %27 = vector.multi_reduction <add>, %26, %cst_12 [0] : vector<8x128xf32> to vector<128xf32>
    %28 = vector.shape_cast %27 : vector<128xf32> to vector<1x128xf32>
    %c3 = arith.constant 3 : index
    %c0_13 = arith.constant 0 : index
    %29 = vector.load %arg10[%c3, %c0_13] : memref<10x128xf32, #tpu.memory_space<vmem>>, vector<1x128xf32>
    tpu.vector_store %arg10[%c3, %c0_13], %28 {strides = array<i32>} : memref<10x128xf32, #tpu.memory_space<vmem>>, vector<1x128xf32>,
    %30 = vector.extract_strided_slice %1 {offsets = [8, 0], sizes = [8, 128], strides = [1, 1]} : vector<32x128xf32> to vector<8x128xf32>
    %31 = vector.extract_strided_slice %1 {offsets = [8, 0], sizes = [8, 128], strides = [1, 1]} : vector<32x128xf32> to vector<8x128xf32>
    %32 = arith.mulf %30, %31 : vector<8x128xf32>
    %cst_14 = arith.constant dense<0.000000e+00> : vector<128xf32>
    %33 = vector.multi_reduction <add>, %32, %cst_14 [0] : vector<8x128xf32> to vector<128xf32>
    %34 = vector.shape_cast %33 : vector<128xf32> to vector<1x128xf32>
    %c4 = arith.constant 4 : index
    %c0_15 = arith.constant 0 : index
    %35 = vector.load %arg10[%c4, %c0_15] : memref<10x128xf32, #tpu.memory_space<vmem>>, vector<1x128xf32>
    tpu.vector_store %arg10[%c4, %c0_15], %34 {strides = array<i32>} : memref<10x128xf32, #tpu.memory_space<vmem>>, vector<1x128xf32>,
    %36 = vector.extract_strided_slice %1 {offsets = [8, 0], sizes = [8, 128], strides = [1, 1]} : vector<32x128xf32> to vector<8x128xf32>
    %37 = vector.extract_strided_slice %1 {offsets = [16, 0], sizes = [8, 128], strides = [1, 1]} : vector<32x128xf32> to vector<8x128xf32>
    %38 = arith.mulf %36, %37 : vector<8x128xf32>
    %cst_16 = arith.constant dense<0.000000e+00> : vector<128xf32>
    %39 = vector.multi_reduction <add>, %38, %cst_16 [0] : vector<8x128xf32> to vector<128xf32>
    %40 = vector.shape_cast %39 : vector<128xf32> to vector<1x128xf32>
    %c5 = arith.constant 5 : index
    %c0_17 = arith.constant 0 : index
    %41 = vector.load %arg10[%c5, %c0_17] : memref<10x128xf32, #tpu.memory_space<vmem>>, vector<1x128xf32>
    tpu.vector_store %arg10[%c5, %c0_17], %40 {strides = array<i32>} : memref<10x128xf32, #tpu.memory_space<vmem>>, vector<1x128xf32>,
    %42 = vector.extract_strided_slice %1 {offsets = [8, 0], sizes = [8, 128], strides = [1, 1]} : vector<32x128xf32> to vector<8x128xf32>
    %43 = vector.extract_strided_slice %1 {offsets = [24, 0], sizes = [8, 128], strides = [1, 1]} : vector<32x128xf32> to vector<8x128xf32>
    %44 = arith.mulf %42, %43 : vector<8x128xf32>
    %cst_18 = arith.constant dense<0.000000e+00> : vector<128xf32>
    %45 = vector.multi_reduction <add>, %44, %cst_18 [0] : vector<8x128xf32> to vector<128xf32>
    %46 = vector.shape_cast %45 : vector<128xf32> to vector<1x128xf32>
    %c6 = arith.constant 6 : index
    %c0_19 = arith.constant 0 : index
    %47 = vector.load %arg10[%c6, %c0_19] : memref<10x128xf32, #tpu.memory_space<vmem>>, vector<1x128xf32>
    tpu.vector_store %arg10[%c6, %c0_19], %46 {strides = array<i32>} : memref<10x128xf32, #tpu.memory_space<vmem>>, vector<1x128xf32>,
    %48 = vector.extract_strided_slice %1 {offsets = [16, 0], sizes = [8, 128], strides = [1, 1]} : vector<32x128xf32> to vector<8x128xf32>
    %49 = vector.extract_strided_slice %1 {offsets = [16, 0], sizes = [8, 128], strides = [1, 1]} : vector<32x128xf32> to vector<8x128xf32>
    %50 = arith.mulf %48, %49 : vector<8x128xf32>
    %cst_20 = arith.constant dense<0.000000e+00> : vector<128xf32>
    %51 = vector.multi_reduction <add>, %50, %cst_20 [0] : vector<8x128xf32> to vector<128xf32>
    %52 = vector.shape_cast %51 : vector<128xf32> to vector<1x128xf32>
    %c7 = arith.constant 7 : index
    %c0_21 = arith.constant 0 : index
    %53 = vector.load %arg10[%c7, %c0_21] : memref<10x128xf32, #tpu.memory_space<vmem>>, vector<1x128xf32>
    tpu.vector_store %arg10[%c7, %c0_21], %52 {strides = array<i32>} : memref<10x128xf32, #tpu.memory_space<vmem>>, vector<1x128xf32>,
    %54 = vector.extract_strided_slice %1 {offsets = [16, 0], sizes = [8, 128], strides = [1, 1]} : vector<32x128xf32> to vector<8x128xf32>
    %55 = vector.extract_strided_slice %1 {offsets = [24, 0], sizes = [8, 128], strides = [1, 1]} : vector<32x128xf32> to vector<8x128xf32>
    %56 = arith.mulf %54, %55 : vector<8x128xf32>
    %cst_22 = arith.constant dense<0.000000e+00> : vector<128xf32>
    %57 = vector.multi_reduction <add>, %56, %cst_22 [0] : vector<8x128xf32> to vector<128xf32>
    %58 = vector.shape_cast %57 : vector<128xf32> to vector<1x128xf32>
    %c8 = arith.constant 8 : index
    %c0_23 = arith.constant 0 : index
    %59 = vector.load %arg10[%c8, %c0_23] : memref<10x128xf32, #tpu.memory_space<vmem>>, vector<1x128xf32>
    tpu.vector_store %arg10[%c8, %c0_23], %58 {strides = array<i32>} : memref<10x128xf32, #tpu.memory_space<vmem>>, vector<1x128xf32>,
    %60 = vector.extract_strided_slice %1 {offsets = [24, 0], sizes = [8, 128], strides = [1, 1]} : vector<32x128xf32> to vector<8x128xf32>
    %61 = vector.extract_strided_slice %1 {offsets = [24, 0], sizes = [8, 128], strides = [1, 1]} : vector<32x128xf32> to vector<8x128xf32>
    %62 = arith.mulf %60, %61 : vector<8x128xf32>
    %cst_24 = arith.constant dense<0.000000e+00> : vector<128xf32>
    %63 = vector.multi_reduction <add>, %62, %cst_24 [0] : vector<8x128xf32> to vector<128xf32>
    %64 = vector.shape_cast %63 : vector<128xf32> to vector<1x128xf32>
    %c9 = arith.constant 9 : index
    %c0_25 = arith.constant 0 : index
    %65 = vector.load %arg10[%c9, %c0_25] : memref<10x128xf32, #tpu.memory_space<vmem>>, vector<1x128xf32>
    tpu.vector_store %arg10[%c9, %c0_25], %64 {strides = array<i32>} : memref<10x128xf32, #tpu.memory_space<vmem>>, vector<1x128xf32>,
    %c0_26 = arith.constant 0 : index
    %c0_27 = arith.constant 0 : index
    %66 = vector.load %arg4[%c0_26, %c0_27] : memref<32x10xf32, #tpu.memory_space<vmem>>, vector<32x10xf32>
    %c0_28 = arith.constant 0 : index
    %c0_29 = arith.constant 0 : index
    %67 = vector.load %arg10[%c0_28, %c0_29] : memref<10x128xf32, #tpu.memory_space<vmem>>, vector<10x128xf32>
    %cst_30 = arith.constant dense<0.000000e+00> : vector<32x128xf32>
    %68 = tpu.matmul %66, %67, %cst_30 {dimension_numbers = #tpu.dot_dimension_numbers<[1], [0], [0], [1], [0, 0, 1, 1], [], []>} : vector<32x10xf32>, vector<10x128xf32>, vector<32x128xf32> -> vector<32x128xf32>
    %c0_31 = arith.constant 0 : index
    %c0_32 = arith.constant 0 : index
    %69 = vector.load %arg8[%c0_31, %c0_32] : memref<65x1xf32, #tpu.memory_space<vmem>>, vector<32x1xf32>
    %c32 = arith.constant 32 : index
    %c0_33 = arith.constant 0 : index
    %70 = vector.load %arg8[%c32, %c0_33] : memref<65x1xf32, #tpu.memory_space<vmem>>, vector<16x1xf32>
    %c48 = arith.constant 48 : index
    %c0_34 = arith.constant 0 : index
    %71 = vector.load %arg8[%c48, %c0_34] : memref<65x1xf32, #tpu.memory_space<vmem>>, vector<8x1xf32>
    %c56 = arith.constant 56 : index
    %c0_35 = arith.constant 0 : index
    %72 = vector.load %arg8[%c56, %c0_35] : memref<65x1xf32, #tpu.memory_space<vmem>>, vector<8x1xf32>
    %c64 = arith.constant 64 : index
    %c0_36 = arith.constant 0 : index
    %73 = vector.load %arg8[%c64, %c0_36] : memref<65x1xf32, #tpu.memory_space<vmem>>, vector<1x1xf32>
    %74 = arith.addf %5, %68 : vector<32x128xf32>
    %75 = vector.broadcast %69 : vector<32x1xf32> to vector<32x128xf32>
    %76 = arith.addf %74, %75 : vector<32x128xf32>
    %cst_37 = arith.constant 0.000000e+00 : f32
    %77 = vector.broadcast %cst_37 : f32 to vector<32x128xf32>
    %78 = arith.maximumf %76, %77 : vector<32x128xf32>
    %cst_38 = arith.constant 0.000000e+00 : f32
    %79 = vector.broadcast %cst_38 : f32 to vector<8x128xf32>
    %80 = arith.maximumf %3, %79 : vector<8x128xf32>
    %c0_39 = arith.constant 0 : index
    %c0_40 = arith.constant 0 : index
    %81 = vector.load %arg5[%c0_39, %c0_40] : memref<16x8xf32, #tpu.memory_space<vmem>>, vector<16x8xf32>
    %cst_41 = arith.constant dense<0.000000e+00> : vector<16x128xf32>
    %82 = tpu.matmul %81, %80, %cst_41 {dimension_numbers = #tpu.dot_dimension_numbers<[1], [0], [0], [1], [0, 0, 1, 1], [], []>} : vector<16x8xf32>, vector<8x128xf32>, vector<16x128xf32> -> vector<16x128xf32>
    %c0_42 = arith.constant 0 : index
    %c0_43 = arith.constant 0 : index
    %83 = vector.load %arg6[%c0_42, %c0_43] : memref<16x32xf32, #tpu.memory_space<vmem>>, vector<16x32xf32>
    %cst_44 = arith.constant dense<0.000000e+00> : vector<16x128xf32>
    %84 = tpu.matmul %83, %78, %cst_44 {dimension_numbers = #tpu.dot_dimension_numbers<[1], [0], [0], [1], [0, 0, 1, 1], [], []>} : vector<16x32xf32>, vector<32x128xf32>, vector<16x128xf32> -> vector<16x128xf32>
    %85 = arith.addf %82, %84 : vector<16x128xf32>
    %86 = vector.broadcast %70 : vector<16x1xf32> to vector<16x128xf32>
    %87 = arith.addf %85, %86 : vector<16x128xf32>
    %cst_45 = arith.constant 0.000000e+00 : f32
    %88 = vector.broadcast %cst_45 : f32 to vector<16x128xf32>
    %89 = arith.maximumf %87, %88 : vector<16x128xf32>
    %c0_46 = arith.constant 0 : index
    %c0_47 = arith.constant 0 : index
    %90 = vector.load %arg7[%c0_46, %c0_47] : memref<8x16xf32, #tpu.memory_space<vmem>>, vector<8x16xf32>
    %cst_48 = arith.constant dense<0.000000e+00> : vector<8x128xf32>
    %91 = tpu.matmul %90, %89, %cst_48 {dimension_numbers = #tpu.dot_dimension_numbers<[1], [0], [0], [1], [0, 0, 1, 1], [], []>} : vector<8x16xf32>, vector<16x128xf32>, vector<8x128xf32> -> vector<8x128xf32>
    %92 = vector.broadcast %71 : vector<8x1xf32> to vector<8x128xf32>
    %93 = arith.addf %91, %92 : vector<8x128xf32>
    %cst_49 = arith.constant 0.000000e+00 : f32
    %94 = vector.broadcast %cst_49 : f32 to vector<8x128xf32>
    %95 = arith.maximumf %93, %94 : vector<8x128xf32>
    %96 = vector.broadcast %72 : vector<8x1xf32> to vector<8x128xf32>
    %97 = arith.mulf %96, %95 : vector<8x128xf32>
    %cst_50 = arith.constant dense<0.000000e+00> : vector<128xf32>
    %98 = vector.multi_reduction <add>, %97, %cst_50 [0] : vector<8x128xf32> to vector<128xf32>
    %99 = vector.shape_cast %98 : vector<128xf32> to vector<1x128xf32>
    %100 = vector.broadcast %73 : vector<1x1xf32> to vector<1x128xf32>
    %101 = arith.addf %99, %100 : vector<1x128xf32>
    %cst_51 = arith.constant 0.000000e+00 : f32
    %102 = vector.broadcast %cst_51 : f32 to vector<1x128xf32>
    %103 = arith.subf %102, %101 : vector<1x128xf32>
    %104 = math.exp %103 : vector<1x128xf32>
    %cst_52 = arith.constant 1.000000e+00 : f32
    %105 = vector.broadcast %cst_52 : f32 to vector<1x128xf32>
    %106 = arith.addf %105, %104 : vector<1x128xf32>
    %107 = tpu.reciprocal %106 {approx = true} : vector<1x128xf32> -> vector<1x128xf32>
    %c0_53 = arith.constant 0 : index
    %c0_54 = arith.constant 0 : index
    %108 = vector.load %arg9[%c0_53, %c0_54] : memref<1x128xf32, #tpu.memory_space<vmem>>, vector<1x128xf32>
    tpu.vector_store %arg9[%c0_53, %c0_54], %107 {strides = array<i32>} : memref<1x128xf32, #tpu.memory_space<vmem>>, vector<1x128xf32>,
    return
  }
  func.func @transform_0(%arg0: i32) -> (i32, i32) {
    %c0_i32 = arith.constant 0 : i32
    %c0_i32_0 = arith.constant 0 : i32
    return %arg0, %c0_i32 : i32, i32
  }
  func.func @transform_1(%arg0: i32) -> (i32, i32) {
    %c0_i32 = arith.constant 0 : i32
    %c0_i32_0 = arith.constant 0 : i32
    return %arg0, %c0_i32 : i32, i32
  }
  func.func @transform_2(%arg0: i32) -> (i32, i32) {
    %c0_i32 = arith.constant 0 : i32
    %c0_i32_0 = arith.constant 0 : i32
    %c0_i32_1 = arith.constant 0 : i32
    return %c0_i32, %c0_i32_0 : i32, i32
  }
  func.func @transform_3(%arg0: i32) -> (i32, i32) {
    %c0_i32 = arith.constant 0 : i32
    %c0_i32_0 = arith.constant 0 : i32
    %c0_i32_1 = arith.constant 0 : i32
    return %c0_i32, %c0_i32_0 : i32, i32
  }
  func.func @transform_4(%arg0: i32) -> (i32, i32) {
    %c0_i32 = arith.constant 0 : i32
    %c0_i32_0 = arith.constant 0 : i32
    %c0_i32_1 = arith.constant 0 : i32
    return %c0_i32, %c0_i32_0 : i32, i32
  }
  func.func @transform_5(%arg0: i32) -> (i32, i32) {
    %c0_i32 = arith.constant 0 : i32
    %c0_i32_0 = arith.constant 0 : i32
    %c0_i32_1 = arith.constant 0 : i32
    return %c0_i32, %c0_i32_0 : i32, i32
  }
  func.func @transform_6(%arg0: i32) -> (i32, i32) {
    %c0_i32 = arith.constant 0 : i32
    %c0_i32_0 = arith.constant 0 : i32
    %c0_i32_1 = arith.constant 0 : i32
    return %c0_i32, %c0_i32_0 : i32, i32
  }
  func.func @transform_7(%arg0: i32) -> (i32, i32) {
    %c0_i32 = arith.constant 0 : i32
    %c0_i32_0 = arith.constant 0 : i32
    %c0_i32_1 = arith.constant 0 : i32
    return %c0_i32, %c0_i32_0 : i32, i32
  }
  func.func @transform_8(%arg0: i32) -> (i32, i32) {
    %c0_i32 = arith.constant 0 : i32
    %c0_i32_0 = arith.constant 0 : i32
    return %c0_i32, %arg0 : i32, i32
  }
}

</mosaic_0001>

<llo_original>
// kernel: tpu_custom_call.1
$region0: #{tpu_custom_call.1}
  #allocation0 [shape = 'u32[]', space=smem, size = 0x4, offset = 0x4, fixed_abs, tag = 'smem constant byte address 0x4 - core index']
  #allocation1 [shape = 'u32[144,128]{1,0:T(1,128)}', space=vmem, size = 0x12000, scoped, tag = 'internal scratch']
  #allocation2 [shape = 'f32[10,128]{1,0:T(8,128)}', space=vmem, size = 0x2000, scoped, tag = 'scratch operand']
  %s0 = inlined_call_operand.vmem [shape: f32[256,32], index: 0, kind: input, shape index: {}]
  %s1 = inlined_call_operand.vmem [shape: f32[256,8], index: 1, kind: input, shape index: {}]
  %s2 = inlined_call_operand.vmem [shape: f32[32,32], index: 2, kind: input, shape index: {}]
  %s3 = inlined_call_operand.vmem [shape: f32[32,10], index: 3, kind: input, shape index: {}]
  %s4 = inlined_call_operand.vmem [shape: f32[16,8], index: 4, kind: input, shape index: {}]
  %s5 = inlined_call_operand.vmem [shape: f32[16,32], index: 5, kind: input, shape index: {}]
  %s6 = inlined_call_operand.vmem [shape: f32[8,16], index: 6, kind: input, shape index: {}]
  %s7 = inlined_call_operand.vmem [shape: f32[65,1], index: 7, kind: input, shape index: {}]
  %s8 = inlined_call_operand.hbm [shape: f32[1,256], index: 8, kind: output, shape index: {}]
  %s9 = sld [smem:[#allocation0]]
  $region65: #{tpu_custom_call.1} parent=0
    _
  %s11 = ssub.s32 1, %s9
  %s12 = scalar_select 0, %s11, %s9
  $region1: #{tpu_custom_call.1} parent=0
    #allocation3 [shape = 'u8[1024]{0}', space=vmem, size = 0x400, scoped, tag = 'output window, operand 0']
    #allocation4 [shape = 's32[2]{0}', space=sflag, size = 0x8, scoped, tag = 'scoped memory for tpu_custom_call.1']
    %13 = vsyncpa [#allocation4], 0
    %s14 = scalar_lea.sflag [#allocation4], 1
    %15 = vsyncpa %s14, 0
    loop: start=0, step=1, limit=4
    $region2: #{tpu_custom_call.1} parent=1 // loop_pre_header
      _
    $region3: #{tpu_custom_call.1} parent=1 // loop_header
      %s17 = sphi 0, %s21
      %p18 = scmp.ge.s32.totalorder %s17, 4
      %s27 = sphi 0, %s29
      %s30 = sphi 0, %s27
      %s31 = sphi 0, %s30
      %s47 = sphi 0, %s31
      %s53 = sphi 0, %s55
      %s56 = sphi 0, %s53
      %s57 = sphi 0, %s56
      %s73 = sphi 0, %s57
      %s77 = sphi 0, %s77
      %s79 = sphi 0, %s77
      %s80 = sphi 0, %s79
      %s94 = sphi 0, %s80
      %s98 = sphi 0, %s98
      %s100 = sphi 0, %s98
      %s101 = sphi 0, %s100
      %s115 = sphi 0, %s101
      %s119 = sphi 0, %s119
      %s121 = sphi 0, %s119
      %s122 = sphi 0, %s121
      %s136 = sphi 0, %s122
      %s140 = sphi 0, %s140
      %s142 = sphi 0, %s140
      %s143 = sphi 0, %s142
      %s157 = sphi 0, %s143
      %s161 = sphi 0, %s161
      %s163 = sphi 0, %s161
      %s164 = sphi 0, %s163
      %s178 = sphi 0, %s164
      %s182 = sphi 0, %s182
      %s184 = sphi 0, %s182
      %s185 = sphi 0, %s184
      %s199 = sphi 0, %s185
      %s205 = sphi 0, %s207
      %s208 = sphi 0, %s205
      %s209 = sphi 0, %s208
      %s225 = sphi 0, %s209
    $region4: #{tpu_custom_call.1} parent=1 // loop_header_branch
      %20 = sbr.rel (%p18) target = $region8
    $region5: #{tpu_custom_call.1} parent=1 // loop_body
      %s22 = ssub.s32 %s17, 1
      %s23 = ssub.s32 %s17, 2
      %s24 = sadd.s32 %s17, 1
      %s25 = ssub.s32 %s17, %s24
      %p26 = scmp.eq.s32.totalorder %s25, 0
      %s28 = sadd.s32 %s27, 1
      %s29 = scalar_select %p26, %s27, %s28
      %p32 = pneg %p26
      %p33 = scmp.eq.s32.totalorder %s17, 1
      %p34 = por %p32, %p33
      %p35 = scmp.ne.s32.totalorder %s27, %s30
      %p36 = scmp.eq.s32.totalorder %s17, 0
      %p37 = por %p35, %p36
      %p38 = scmp.ne.s32.totalorder %s27, %s30
      %p39 = scmp.eq.s32.totalorder %s22, 1
      %p40 = por %p38, %p39
      %p41 = scmp.ne.s32.totalorder %s30, %s31
      %p42 = scmp.eq.s32.totalorder %s22, 0
      %p43 = por %p41, %p42
      %p44 = scmp.ne.s32.totalorder %s30, %s31
      %p45 = scmp.eq.s32.totalorder %s23, 1
      %p46 = por %p44, %p45
      %p48 = scmp.ne.s32.totalorder %s31, %s47
      %p49 = scmp.eq.s32.totalorder %s23, 0
      %p50 = por %p48, %p49
      %s51 = ssub.s32 %s17, %s24
      %p52 = scmp.eq.s32.totalorder %s51, 0
      %s54 = sadd.s32 %s53, 1
      %s55 = scalar_select %p52, %s53, %s54
      %p58 = pneg %p52
      %p59 = scmp.eq.s32.totalorder %s17, 1
      %p60 = por %p58, %p59
      %p61 = scmp.ne.s32.totalorder %s53, %s56
      %p62 = scmp.eq.s32.totalorder %s17, 0
      %p63 = por %p61, %p62
      %p64 = scmp.ne.s32.totalorder %s53, %s56
      %p65 = scmp.eq.s32.totalorder %s22, 1
      %p66 = por %p64, %p65
      %p67 = scmp.ne.s32.totalorder %s56, %s57
      %p68 = scmp.eq.s32.totalorder %s22, 0
      %p69 = por %p67, %p68
      %p70 = scmp.ne.s32.totalorder %s56, %s57
      %p71 = scmp.eq.s32.totalorder %s23, 1
      %p72 = por %p70, %p71
      %p74 = scmp.ne.s32.totalorder %s57, %s73
      %p75 = scmp.eq.s32.totalorder %s23, 0
      %p76 = por %p74, %p75
      %s78 = sadd.s32 %s77, 1
      %p81 = scmp.eq.s32.totalorder %s17, 1
      %p82 = scmp.ne.s32.totalorder %s77, %s79
      %p83 = scmp.eq.s32.totalorder %s17, 0
      %p84 = por %p82, %p83
      %p85 = scmp.ne.s32.totalorder %s77, %s79
      %p86 = scmp.eq.s32.totalorder %s22, 1
      %p87 = por %p85, %p86
      %p88 = scmp.ne.s32.totalorder %s79, %s80
      %p89 = scmp.eq.s32.totalorder %s22, 0
      %p90 = por %p88, %p89
      %p91 = scmp.ne.s32.totalorder %s79, %s80
      %p92 = scmp.eq.s32.totalorder %s23, 1
      %p93 = por %p91, %p92
      %p95 = scmp.ne.s32.totalorder %s80, %s94
      %p96 = scmp.eq.s32.totalorder %s23, 0
      %p97 = por %p95, %p96
      %s99 = sadd.s32 %s98, 1
      %p102 = scmp.eq.s32.totalorder %s17, 1
      %p103 = scmp.ne.s32.totalorder %s98, %s100
      %p104 = scmp.eq.s32.totalorder %s17, 0
      %p105 = por %p103, %p104
      %p106 = scmp.ne.s32.totalorder %s98, %s100
      %p107 = scmp.eq.s32.totalorder %s22, 1
      %p108 = por %p106, %p107
      %p109 = scmp.ne.s32.totalorder %s100, %s101
      %p110 = scmp.eq.s32.totalorder %s22, 0
      %p111 = por %p109, %p110
      %p112 = scmp.ne.s32.totalorder %s100, %s101
      %p113 = scmp.eq.s32.totalorder %s23, 1
      %p114 = por %p112, %p113
      %p116 = scmp.ne.s32.totalorder %s101, %s115
      %p117 = scmp.eq.s32.totalorder %s23, 0
      %p118 = por %p116, %p117
      %s120 = sadd.s32 %s119, 1
      %p123 = scmp.eq.s32.totalorder %s17, 1
      %p124 = scmp.ne.s32.totalorder %s119, %s121
      %p125 = scmp.eq.s32.totalorder %s17, 0
      %p126 = por %p124, %p125
      %p127 = scmp.ne.s32.totalorder %s119, %s121
      %p128 = scmp.eq.s32.totalorder %s22, 1
      %p129 = por %p127, %p128
      %p130 = scmp.ne.s32.totalorder %s121, %s122
      %p131 = scmp.eq.s32.totalorder %s22, 0
      %p132 = por %p130, %p131
      %p133 = scmp.ne.s32.totalorder %s121, %s122
      %p134 = scmp.eq.s32.totalorder %s23, 1
      %p135 = por %p133, %p134
      %p137 = scmp.ne.s32.totalorder %s122, %s136
      %p138 = scmp.eq.s32.totalorder %s23, 0
      %p139 = por %p137, %p138
      %s141 = sadd.s32 %s140, 1
      %p144 = scmp.eq.s32.totalorder %s17, 1
      %p145 = scmp.ne.s32.totalorder %s140, %s142
      %p146 = scmp.eq.s32.totalorder %s17, 0
      %p147 = por %p145, %p146
      %p148 = scmp.ne.s32.totalorder %s140, %s142
      %p149 = scmp.eq.s32.totalorder %s22, 1
      %p150 = por %p148, %p149
      %p151 = scmp.ne.s32.totalorder %s142, %s143
      %p152 = scmp.eq.s32.totalorder %s22, 0
      %p153 = por %p151, %p152
      %p154 = scmp.ne.s32.totalorder %s142, %s143
      %p155 = scmp.eq.s32.totalorder %s23, 1
      %p156 = por %p154, %p155
      %p158 = scmp.ne.s32.totalorder %s143, %s157
      %p159 = scmp.eq.s32.totalorder %s23, 0
      %p160 = por %p158, %p159
      %s162 = sadd.s32 %s161, 1
      %p165 = scmp.eq.s32.totalorder %s17, 1
      %p166 = scmp.ne.s32.totalorder %s161, %s163
      %p167 = scmp.eq.s32.totalorder %s17, 0
      %p168 = por %p166, %p167
      %p169 = scmp.ne.s32.totalorder %s161, %s163
      %p170 = scmp.eq.s32.totalorder %s22, 1
      %p171 = por %p169, %p170
      %p172 = scmp.ne.s32.totalorder %s163, %s164
      %p173 = scmp.eq.s32.totalorder %s22, 0
      %p174 = por %p172, %p173
      %p175 = scmp.ne.s32.totalorder %s163, %s164
      %p176 = scmp.eq.s32.totalorder %s23, 1
      %p177 = por %p175, %p176
      %p179 = scmp.ne.s32.totalorder %s164, %s178
      %p180 = scmp.eq.s32.totalorder %s23, 0
      %p181 = por %p179, %p180
      %s183 = sadd.s32 %s182, 1
      %p186 = scmp.eq.s32.totalorder %s17, 1
      %p187 = scmp.ne.s32.totalorder %s182, %s184
      %p188 = scmp.eq.s32.totalorder %s17, 0
      %p189 = por %p187, %p188
      %p190 = scmp.ne.s32.totalorder %s182, %s184
      %p191 = scmp.eq.s32.totalorder %s22, 1
      %p192 = por %p190, %p191
      %p193 = scmp.ne.s32.totalorder %s184, %s185
      %p194 = scmp.eq.s32.totalorder %s22, 0
      %p195 = por %p193, %p194
      %p196 = scmp.ne.s32.totalorder %s184, %s185
      %p197 = scmp.eq.s32.totalorder %s23, 1
      %p198 = por %p196, %p197
      %p200 = scmp.ne.s32.totalorder %s185, %s199
      %p201 = scmp.eq.s32.totalorder %s23, 0
      %p202 = por %p200, %p201
      %s203 = ssub.s32 %s17, %s24
      %p204 = scmp.eq.s32.totalorder %s203, 0
      %s206 = sadd.s32 %s205, 1
      %s207 = scalar_select %p204, %s205, %s206
      %p210 = pneg %p204
      %p211 = scmp.eq.s32.totalorder %s17, 1
      %p212 = por %p210, %p211
      %p213 = scmp.ne.s32.totalorder %s205, %s208
      %p214 = scmp.eq.s32.totalorder %s17, 0
      %p215 = por %p213, %p214
      %p216 = scmp.ne.s32.totalorder %s205, %s208
      %p217 = scmp.eq.s32.totalorder %s22, 1
      %p218 = por %p216, %p217
      %p219 = scmp.ne.s32.totalorder %s208, %s209
      %p220 = scmp.eq.s32.totalorder %s22, 0
      %p221 = por %p219, %p220
      %p222 = scmp.ne.s32.totalorder %s208, %s209
      %p223 = scmp.eq.s32.totalorder %s23, 1
      %p224 = por %p222, %p223
      %p226 = scmp.ne.s32.totalorder %s209, %s225
      %p227 = scmp.eq.s32.totalorder %s23, 0
      %p228 = por %p226, %p227
      %p229 = scmp.le.s32.totalorder 1, %s17
      %p230 = scmp.lt.s32.totalorder %s17, 3
      %p231 = pnand %p229, %p230
      %p232 = pneg %p231
      // Predicated region
      $region9: #{tpu_custom_call.1} parent=5 // pred_check
        _
      $region10: #{tpu_custom_call.1} parent=5 // pred_check_branch
        %234 = sbr.rel (%p231) target = $region12
      $region11: #{tpu_custom_call.1} parent=5 // pred_region
        %s235 = ssub.s32 %s17, 1
        // Predicated region
        $region13: #{tpu_custom_call.1} parent=11 // pred_check
          %p236 = pneg %p90
        $region14: #{tpu_custom_call.1} parent=11 // pred_check_branch
          %238 = sbr.rel (%p236) target = $region16
        $region15: #{tpu_custom_call.1} parent=11 // pred_region
          _
        $region16: #{tpu_custom_call.1} parent=11 // pred_fallthru
          _
        // Predicated region
        $region17: #{tpu_custom_call.1} parent=11 // pred_check
          %p239 = pneg %p111
        $region18: #{tpu_custom_call.1} parent=11 // pred_check_branch
          %241 = sbr.rel (%p239) target = $region20
        $region19: #{tpu_custom_call.1} parent=11 // pred_region
          _
        $region20: #{tpu_custom_call.1} parent=11 // pred_fallthru
          _
        // Predicated region
        $region21: #{tpu_custom_call.1} parent=11 // pred_check
          %p242 = pneg %p132
        $region22: #{tpu_custom_call.1} parent=11 // pred_check_branch
          %244 = sbr.rel (%p242) target = $region24
        $region23: #{tpu_custom_call.1} parent=11 // pred_region
          _
        $region24: #{tpu_custom_call.1} parent=11 // pred_fallthru
          _
        // Predicated region
        $region25: #{tpu_custom_call.1} parent=11 // pred_check
          %p245 = pneg %p153
        $region26: #{tpu_custom_call.1} parent=11 // pred_check_branch
          %247 = sbr.rel (%p245) target = $region28
        $region27: #{tpu_custom_call.1} parent=11 // pred_region
          _
        $region28: #{tpu_custom_call.1} parent=11 // pred_fallthru
          _
        // Predicated region
        $region29: #{tpu_custom_call.1} parent=11 // pred_check
          %p248 = pneg %p174
        $region30: #{tpu_custom_call.1} parent=11 // pred_check_branch
          %250 = sbr.rel (%p248) target = $region32
        $region31: #{tpu_custom_call.1} parent=11 // pred_region
          _
        $region32: #{tpu_custom_call.1} parent=11 // pred_fallthru
          _
        // Predicated region
        $region33: #{tpu_custom_call.1} parent=11 // pred_check
          %p251 = pneg %p195
        $region34: #{tpu_custom_call.1} parent=11 // pred_check_branch
          %253 = sbr.rel (%p251) target = $region36
        $region35: #{tpu_custom_call.1} parent=11 // pred_region
          _
        $region36: #{tpu_custom_call.1} parent=11 // pred_fallthru
          _
      $region12: #{tpu_custom_call.1} parent=5 // pred_fallthru
        _
      %p254 = scmp.lt.s32.totalorder %s17, 2
      // Predicated region
      $region37: #{tpu_custom_call.1} parent=5 // pred_check
        %p255 = pneg %p254
      $region38: #{tpu_custom_call.1} parent=5 // pred_check_branch
        %257 = sbr.rel (%p255) target = $region40
      $region39: #{tpu_custom_call.1} parent=5 // pred_region
        // Predicated region
        $region41: #{tpu_custom_call.1} parent=39 // pred_check
          %p258 = pneg %p37
        $region42: #{tpu_custom_call.1} parent=39 // pred_check_branch
          %260 = sbr.rel (%p258) target = $region44
        $region43: #{tpu_custom_call.1} parent=39 // pred_region
          %s261 = smul.u32 16, %s17
          %p262 = scmp.lt.s32.totalorder %s261, 31
          %s263 = scalar_select %p262, %s261, 31
          %s264 = smul.addr %s263, 8
          %s265 = scalar_lea.vmem %s0, %s264
          %s266 = smul.u32 16, %s17
        $region44: #{tpu_custom_call.1} parent=39 // pred_fallthru
          _
        // Predicated region
        $region45: #{tpu_custom_call.1} parent=39 // pred_check
          %p267 = pneg %p63
        $region46: #{tpu_custom_call.1} parent=39 // pred_check_branch
          %269 = sbr.rel (%p267) target = $region48
        $region47: #{tpu_custom_call.1} parent=39 // pred_region
          %s270 = smul.u32 16, %s17
          %p271 = scmp.lt.s32.totalorder %s270, 31
          %s272 = scalar_select %p271, %s270, 31
          %s273 = smul.addr %s272, 8
          %s274 = scalar_lea.vmem %s1, %s273
          %s275 = smul.u32 16, %s17
        $region48: #{tpu_custom_call.1} parent=39 // pred_fallthru
          _
      $region40: #{tpu_custom_call.1} parent=5 // pred_fallthru
        _
      %p276 = scmp.le.s32.totalorder 1, %s17
      %p277 = scmp.lt.s32.totalorder %s17, 3
      %p278 = pnand %p276, %p277
      %p279 = pneg %p278
      // Predicated region
      $region49: #{tpu_custom_call.1} parent=5 // pred_check
        _
      $region50: #{tpu_custom_call.1} parent=5 // pred_check_branch
        %281 = sbr.rel (%p278) target = $region52
      $region51: #{tpu_custom_call.1} parent=5 // pred_region
        %s282 = ssub.s32 %s17, 1
        %s283 = smul.u32 16, %s22
        %p284 = scmp.lt.s32.totalorder %s283, 31
        %s285 = scalar_select %p284, %s283, 31
        %s286 = smul.addr %s285, 8
        %s287 = scalar_lea.vmem %s0, %s286
        %p288 = pneg %p43
        %p289 = pneg %p40
        %s290 = smul.u32 16, %s22
        %p291 = scmp.lt.s32.totalorder %s290, 31
        %s292 = scalar_select %p291, %s290, 31
        %s293 = smul.addr %s292, 8
        %s294 = scalar_lea.vmem %s1, %s293
        %p295 = pneg %p69
        %p296 = pneg %p66
        %p297 = pneg %p90
        %p298 = pneg %p87
        %p299 = pneg %p111
        %p300 = pneg %p108
        %p301 = pneg %p132
        %p302 = pneg %p129
        %p303 = pneg %p153
        %p304 = pneg %p150
        %p305 = pneg %p174
        %p306 = pneg %p171
        %p307 = pneg %p195
        %p308 = pneg %p192
        %p309 = pneg %p221
        %p310 = pneg %p218
        %s311 = sand.u32 %s208, 1
        %s312 = scalar_lea.sflag [#allocation4], %s311
        %s313 = sand.u32 %s208, 1
        %s314 = scalar_lea.vmem [#allocation3], %s313
        %s315 = smul.u32 16, %s22
        %p316 = scmp.lt.s32.totalorder %s315, 31
        %s317 = scalar_select %p316, %s315, 31
        %s318 = smul.addr %s317, 8
        %s319 = scalar_lea.vmem %s0, %s318
        %s320 = smul.u32 16, %s22
        %s321 = smul.u32 16, %s22
        %p322 = scmp.lt.s32.totalorder %s321, 31
        %s323 = scalar_select %p322, %s321, 31
        %s324 = smul.addr %s323, 8
        %s325 = scalar_lea.vmem %s1, %s324
        %s326 = smul.u32 16, %s22
        %v327 = vld [vmem:[%s319] sm:$0xff]
        %v328 = vld [vmem:[%s319 + $0x8] sm:$0xff]
        %v329 = vld [vmem:[%s319 + $0x10] sm:$0xff]
        %v330 = vld [vmem:[%s319 + $0x18] sm:$0xff]
        %v331 = vld [vmem:[%s319 + $0x20] sm:$0xff]
        %v332 = vld [vmem:[%s319 + $0x28] sm:$0xff]
        %v333 = vld [vmem:[%s319 + $0x30] sm:$0xff]
        %v334 = vld [vmem:[%s319 + $0x38] sm:$0xff]
        %v335 = vld [vmem:[%s319 + $0x40] sm:$0xff]
        %v336 = vld [vmem:[%s319 + $0x48] sm:$0xff]
        %v337 = vld [vmem:[%s319 + $0x50] sm:$0xff]
        %v338 = vld [vmem:[%s319 + $0x58] sm:$0xff]
        %v339 = vld [vmem:[%s319 + $0x60] sm:$0xff]
        %v340 = vld [vmem:[%s319 + $0x68] sm:$0xff]
        %v341 = vld [vmem:[%s319 + $0x70] sm:$0xff]
        %v342 = vld [vmem:[%s319 + $0x78] sm:$0xff]
        %343 = vxpose.xlu0.b32.start [1/16] %v327, 128
        %344 = vxpose.xlu0.b32.cont [2/16] %v328, 128
        %345 = vxpose.xlu0.b32.cont [3/16] %v329, 128
        %346 = vxpose.xlu0.b32.cont [4/16] %v330, 128
        %347 = vxpose.xlu0.b32.cont [5/16] %v331, 128
        %348 = vxpose.xlu0.b32.cont [6/16] %v332, 128
        %349 = vxpose.xlu0.b32.cont [7/16] %v333, 128
        %350 = vxpose.xlu0.b32.cont [8/16] %v334, 128
        %351 = vxpose.xlu0.b32.cont [9/16] %v335, 128
        %352 = vxpose.xlu0.b32.cont [10/16] %v336, 128
        %353 = vxpose.xlu0.b32.cont [11/16] %v337, 128
        %354 = vxpose.xlu0.b32.cont [12/16] %v338, 128
        %355 = vxpose.xlu0.b32.cont [13/16] %v339, 128
        %356 = vxpose.xlu0.b32.cont [14/16] %v340, 128
        %357 = vxpose.xlu0.b32.cont [15/16] %v341, 128
        %358 = vxpose.xlu0.b32.end [16/16] %v342, 128
        %v359 = vpop.trf.xlu0
        %v360 = vpop.trf.xlu0
        %v361 = vpop.trf.xlu0
        %v362 = vpop.trf.xlu0
        %v363 = vpop.trf.xlu0
        %v364 = vpop.trf.xlu0
        %v365 = vpop.trf.xlu0
        %v366 = vpop.trf.xlu0
        %v367 = vpop.trf.xlu0
        %v368 = vpop.trf.xlu0
        %v369 = vpop.trf.xlu0
        %v370 = vpop.trf.xlu0
        %v371 = vpop.trf.xlu0
        %v372 = vpop.trf.xlu0
        %v373 = vpop.trf.xlu0
        %v374 = vpop.trf.xlu0
        %v375 = vld [vmem:[%s325] sm:$0xff]
        %v376 = vld [vmem:[%s325 + $0x8] sm:$0xff]
        %v377 = vld [vmem:[%s325 + $0x10] sm:$0xff]
        %v378 = vld [vmem:[%s325 + $0x18] sm:$0xff]
        %v379 = vld [vmem:[%s325 + $0x20] sm:$0xff]
        %v380 = vld [vmem:[%s325 + $0x28] sm:$0xff]
        %v381 = vld [vmem:[%s325 + $0x30] sm:$0xff]
        %v382 = vld [vmem:[%s325 + $0x38] sm:$0xff]
        %v383 = vld [vmem:[%s325 + $0x40] sm:$0xff]
        %v384 = vld [vmem:[%s325 + $0x48] sm:$0xff]
        %v385 = vld [vmem:[%s325 + $0x50] sm:$0xff]
        %v386 = vld [vmem:[%s325 + $0x58] sm:$0xff]
        %v387 = vld [vmem:[%s325 + $0x60] sm:$0xff]
        %v388 = vld [vmem:[%s325 + $0x68] sm:$0xff]
        %v389 = vld [vmem:[%s325 + $0x70] sm:$0xff]
        %v390 = vld [vmem:[%s325 + $0x78] sm:$0xff]
        %391 = vxpose.xlu0.b32.start [1/16] %v375, 128
        %392 = vxpose.xlu0.b32.cont [2/16] %v376, 128
        %393 = vxpose.xlu0.b32.cont [3/16] %v377, 128
        %394 = vxpose.xlu0.b32.cont [4/16] %v378, 128
        %395 = vxpose.xlu0.b32.cont [5/16] %v379, 128
        %396 = vxpose.xlu0.b32.cont [6/16] %v380, 128
        %397 = vxpose.xlu0.b32.cont [7/16] %v381, 128
        %398 = vxpose.xlu0.b32.cont [8/16] %v382, 128
        %399 = vxpose.xlu0.b32.cont [9/16] %v383, 128
        %400 = vxpose.xlu0.b32.cont [10/16] %v384, 128
        %401 = vxpose.xlu0.b32.cont [11/16] %v385, 128
        %402 = vxpose.xlu0.b32.cont [12/16] %v386, 128
        %403 = vxpose.xlu0.b32.cont [13/16] %v387, 128
        %404 = vxpose.xlu0.b32.cont [14/16] %v388, 128
        %405 = vxpose.xlu0.b32.cont [15/16] %v389, 128
        %406 = vxpose.xlu0.b32.end [16/16] %v390, 128
        %v407 = vpop.trf.xlu0
        %v408 = vpop.trf.xlu0
        %v409 = vpop.trf.xlu0
        %v410 = vpop.trf.xlu0
        %v411 = vpop.trf.xlu0
        %v412 = vpop.trf.xlu0
        %v413 = vpop.trf.xlu0
        %v414 = vpop.trf.xlu0
        %v415 = vpop.trf.xlu0
        %v416 = vpop.trf.xlu0
        %v417 = vpop.trf.xlu0
        %v418 = vpop.trf.xlu0
        %v419 = vpop.trf.xlu0
        %v420 = vpop.trf.xlu0
        %v421 = vpop.trf.xlu0
        %v422 = vpop.trf.xlu0
        %v423 = vld [vmem:[%s2] sm:$0xff]
        %v424 = vld [vmem:[%s2 + $0x8] sm:$0xff]
        %v425 = vld [vmem:[%s2 + $0x10] sm:$0xff]
        %v426 = vld [vmem:[%s2 + $0x18] sm:$0xff]
        %v427 = vmul.f32 %v359, %v359
        %v428 = vrot.slane %v427, 4
        %v429 = vadd.f32 %v427, %v428
        %v430 = vrot.slane %v429, 2
        %v431 = vadd.f32 %v429, %v430
        %v432 = vrot.slane %v431, 1
        %v433 = vadd.f32 %v431, %v432
        %434 = vst [vmem:[#allocation2] sm:$0x1] %v433
        %v435 = vmul.f32 %v359, %v360
        %v436 = vrot.slane %v435, 4
        %v437 = vadd.f32 %v435, %v436
        %v438 = vrot.slane %v437, 2
        %v439 = vadd.f32 %v437, %v438
        %v440 = vrot.slane %v439, 1
        %v441 = vadd.f32 %v439, %v440
        %442 = vst [vmem:[#allocation2 + $0x1] sm:$0x1] %v441
        %v443 = vmul.f32 %v359, %v361
        %v444 = vrot.slane %v443, 4
        %v445 = vadd.f32 %v443, %v444
        %v446 = vrot.slane %v445, 2
        %v447 = vadd.f32 %v445, %v446
        %v448 = vrot.slane %v447, 1
        %v449 = vadd.f32 %v447, %v448
        %450 = vst [vmem:[#allocation2 + $0x2] sm:$0x1] %v449
        %v451 = vmul.f32 %v359, %v362
        %v452 = vrot.slane %v451, 4
        %v453 = vadd.f32 %v451, %v452
        %v454 = vrot.slane %v453, 2
        %v455 = vadd.f32 %v453, %v454
        %v456 = vrot.slane %v455, 1
        %v457 = vadd.f32 %v455, %v456
        %458 = vst [vmem:[#allocation2 + $0x3] sm:$0x1] %v457
        %v459 = vmul.f32 %v360, %v360
        %v460 = vrot.slane %v459, 4
        %v461 = vadd.f32 %v459, %v460
        %v462 = vrot.slane %v461, 2
        %v463 = vadd.f32 %v461, %v462
        %v464 = vrot.slane %v463, 1
        %v465 = vadd.f32 %v463, %v464
        %466 = vst [vmem:[#allocation2 + $0x4] sm:$0x1] %v465
        %v467 = vmul.f32 %v360, %v361
        %v468 = vrot.slane %v467, 4
        %v469 = vadd.f32 %v467, %v468
        %v470 = vrot.slane %v469, 2
        %v471 = vadd.f32 %v469, %v470
        %v472 = vrot.slane %v471, 1
        %v473 = vadd.f32 %v471, %v472
        %474 = vst [vmem:[#allocation2 + $0x5] sm:$0x1] %v473
        %v475 = vmul.f32 %v360, %v362
        %v476 = vrot.slane %v475, 4
        %v477 = vadd.f32 %v475, %v476
        %v478 = vrot.slane %v477, 2
        %v479 = vadd.f32 %v477, %v478
        %v480 = vrot.slane %v479, 1
        %v481 = vadd.f32 %v479, %v480
        %482 = vst [vmem:[#allocation2 + $0x6] sm:$0x1] %v481
        %v483 = vmul.f32 %v361, %v361
        %v484 = vrot.slane %v483, 4
        %v485 = vadd.f32 %v483, %v484
        %v486 = vrot.slane %v485, 2
        %v487 = vadd.f32 %v485, %v486
        %v488 = vrot.slane %v487, 1
        %v489 = vadd.f32 %v487, %v488
        %490 = vst [vmem:[#allocation2 + $0x7] sm:$0x1] %v489
        %v491 = vmul.f32 %v361, %v362
        %v492 = vrot.slane %v491, 4
        %v493 = vadd.f32 %v491, %v492
        %v494 = vrot.slane %v493, 2
        %v495 = vadd.f32 %v493, %v494
        %v496 = vrot.slane %v495, 1
        %v497 = vadd.f32 %v495, %v496
        %498 = vst [vmem:[#allocation2 + $0x8] sm:$0x1] %v497
        %v499 = vmul.f32 %v362, %v362
        %v500 = vrot.slane %v499, 4
        %v501 = vadd.f32 %v499, %v500
        %v502 = vrot.slane %v501, 2
        %v503 = vadd.f32 %v501, %v502
        %v504 = vrot.slane %v503, 1
        %v505 = vadd.f32 %v503, %v504
        %506 = vst [vmem:[#allocation2 + $0x9] sm:$0x1] %v505
        %v507 = vld [vmem:[%s3] sm:$0xff]
        %v508 = vld [vmem:[%s3 + $0x8] sm:$0xff]
        %v509 = vld [vmem:[%s3 + $0x10] sm:$0xff]
        %v510 = vld [vmem:[%s3 + $0x18] sm:$0xff]
        %v511 = vld [vmem:[#allocation2] sm:$0xff]
        %v512 = vld [vmem:[#allocation2 + $0x8] sm:$0x3]
        %vm513 = vcmask 80896
        %v515 = vsel %vm513, %v507, 0
        %v518 = vsel %vm513, %v508, 0
        %v521 = vsel %vm513, %v509, 0
        %v524 = vsel %vm513, %v510, 0
        %vm526 = vcmask 1041408
        %v528 = vsel %vm526, %v512, 0
        %530 = vmatprep.subr.mxu0 0.0
        %531 = vmatpush1.msra.mxu0 %v511
        %532 = vmatprep.subr.mxu0 0.0
        %533 = vmatpush1.msra.mxu0 %v528
        %534 = vmatprep.subr.mxu0 0.0
        %535 = vmatpush1.msra.mxu0 0.0
        %536 = vmatprep.subr.mxu0 0.0
        %537 = vmatpush1.msra.mxu0 0.0
        %538 = vmatprep.subr.mxu0 0.0
        %539 = vmatpush1.msra.mxu0 0.0
        %540 = vmatprep.subr.mxu0 0.0
        %541 = vmatpush1.msra.mxu0 0.0
        %542 = vmatprep.subr.mxu0 0.0
        %543 = vmatpush1.msra.mxu0 0.0
        %544 = vmatprep.subr.mxu0 0.0
        %545 = vmatpush1.msra.mxu0 0.0
        %546 = vmatprep.subr.mxu0 0.0
        %547 = vmatpush1.msra.mxu0 0.0
        %548 = vmatprep.subr.mxu0 0.0
        %549 = vmatpush1.msra.mxu0 0.0
        %550 = vmatprep.subr.mxu0 0.0
        %551 = vmatpush1.msra.mxu0 0.0
        %552 = vmatprep.subr.mxu0 0.0
        %553 = vmatpush1.msra.mxu0 0.0
        %554 = vmatprep.subr.mxu0 0.0
        %555 = vmatpush1.msra.mxu0 0.0
        %556 = vmatprep.subr.mxu0 0.0
        %557 = vmatpush1.msra.mxu0 0.0
        %558 = vmatprep.subr.mxu0 0.0
        %559 = vmatpush1.msra.mxu0 0.0
        %560 = vmatprep.subr.mxu0 0.0
        %561 = vmatpush1.msra.mxu0 0.0
        %562 = vmatprep.subr.mxu0 0.0
        %563 = vmatpush1.msra.mxu0 0.0
        %564 = vmatprep.subr.mxu0 0.0
        %565 = vmatpush1.msra.mxu0 0.0
        %566 = vmatprep.subr.mxu0 0.0
        %567 = vmatpush1.msra.mxu0 0.0
        %568 = vmatprep.subr.mxu0 0.0
        %569 = vmatpush1.msra.mxu0 0.0
        %570 = vmatprep.subr.mxu0 0.0
        %571 = vmatpush1.msra.mxu0 0.0
        %572 = vmatprep.subr.mxu0 0.0
        %573 = vmatpush1.msra.mxu0 0.0
        %574 = vmatprep.subr.mxu0 0.0
        %575 = vmatpush1.msra.mxu0 0.0
        %576 = vmatprep.subr.mxu0 0.0
        %577 = vmatpush1.msra.mxu0 0.0
        %578 = vmatprep.subr.mxu0 0.0
        %579 = vmatpush1.msra.mxu0 0.0
        %580 = vmatprep.subr.mxu0 0.0
        %581 = vmatpush1.msra.mxu0 0.0
        %582 = vmatprep.subr.mxu0 0.0
        %583 = vmatpush1.msra.mxu0 0.0
        %584 = vmatprep.subr.mxu0 0.0
        %585 = vmatpush1.msra.mxu0 0.0
        %586 = vmatprep.subr.mxu0 0.0
        %587 = vmatpush1.msra.mxu0 0.0
        %588 = vmatprep.subr.mxu0 0.0
        %589 = vmatpush1.msra.mxu0 0.0
        %590 = vmatprep.subr.mxu0 0.0
        %591 = vmatpush1.msra.mxu0 0.0
        %592 = vmatprep.subr.mxu0 0.0
        %593 = vmatpush1.msra.mxu0 0.0
        %594 = vmatprep.mubr.f32.mxu0 0.0
        %595 = vmatmul.mubr.f32.gmra.mrb[0].mxu0 %v515
        %v596 = vpop.f32.mrb[0].mxu0
        %v597 = vadd.f32 0.0, %v596
        %v598 = vpop.f32.mrb[0].mxu0
        %599 = vmatprep.mubr.f32.mxu0 0.0
        %600 = vmatmul.mubr.f32.gmra.mrb[0].mxu0 %v518
        %v601 = vpop.f32.mrb[0].mxu0
        %v602 = vadd.f32 0.0, %v601
        %v603 = vpop.f32.mrb[0].mxu0
        %604 = vmatprep.mubr.f32.mxu0 0.0
        %605 = vmatmul.mubr.f32.gmra.mrb[0].mxu0 %v521
        %v606 = vpop.f32.mrb[0].mxu0
        %v607 = vadd.f32 0.0, %v606
        %v608 = vpop.f32.mrb[0].mxu0
        %609 = vmatprep.mubr.f32.mxu0 0.0
        %610 = vmatmul.mubr.f32.gmra.mrb[0].mxu0 %v524
        %v611 = vpop.f32.mrb[0].mxu0
        %v612 = vadd.f32 0.0, %v611
        %v613 = vpop.f32.mrb[0].mxu0
        %614 = vdwg.mxu0
        %v615 = vld [vmem:[%s7] sm:$0xff]
        %v616 = vld [vmem:[%s7 + $0x8] sm:$0xff]
        %v617 = vld [vmem:[%s7 + $0x10] sm:$0xff]
        %v618 = vld [vmem:[%s7 + $0x18] sm:$0xff]
        %v619 = vld [vmem:[%s7 + $0x20] sm:$0xff]
        %v620 = vld [vmem:[%s7 + $0x28] sm:$0xff]
        %v621 = vld [vmem:[%s7 + $0x30] sm:$0xff]
        %v622 = vld [vmem:[%s7 + $0x38] sm:$0xff]
        %v623 = vld [vmem:[%s7 + $0x40] sm:$0x1]
        %vm624 = vcmask 261120
        %v626 = vsel %vm624, %v423, 0
        %v629 = vsel %vm624, %v424, 0
        %v632 = vsel %vm624, %v425, 0
        %v635 = vsel %vm624, %v426, 0
        %637 = vmatprep.subr.mxu0 0.0
        %638 = vmatpush1.msra.mxu0 %v359
        %639 = vmatprep.subr.mxu0 0.0
        %640 = vmatpush1.msra.mxu0 %v360
        %641 = vmatprep.subr.mxu0 0.0
        %642 = vmatpush1.msra.mxu0 %v361
        %643 = vmatprep.subr.mxu0 0.0
        %644 = vmatpush1.msra.mxu0 %v362
        %645 = vmatprep.subr.mxu0 0.0
        %646 = vmatpush1.msra.mxu0 0.0
        %647 = vmatprep.subr.mxu0 0.0
        %648 = vmatpush1.msra.mxu0 0.0
        %649 = vmatprep.subr.mxu0 0.0
        %650 = vmatpush1.msra.mxu0 0.0
        %651 = vmatprep.subr.mxu0 0.0
        %652 = vmatpush1.msra.mxu0 0.0
        %653 = vmatprep.subr.mxu0 0.0
        %654 = vmatpush1.msra.mxu0 0.0
        %655 = vmatprep.subr.mxu0 0.0
        %656 = vmatpush1.msra.mxu0 0.0
        %657 = vmatprep.subr.mxu0 0.0
        %658 = vmatpush1.msra.mxu0 0.0
        %659 = vmatprep.subr.mxu0 0.0
        %660 = vmatpush1.msra.mxu0 0.0
        %661 = vmatprep.subr.mxu0 0.0
        %662 = vmatpush1.msra.mxu0 0.0
        %663 = vmatprep.subr.mxu0 0.0
        %664 = vmatpush1.msra.mxu0 0.0
        %665 = vmatprep.subr.mxu0 0.0
        %666 = vmatpush1.msra.mxu0 0.0
        %667 = vmatprep.subr.mxu0 0.0
        %668 = vmatpush1.msra.mxu0 0.0
        %669 = vmatprep.subr.mxu0 0.0
        %670 = vmatpush1.msra.mxu0 0.0
        %671 = vmatprep.subr.mxu0 0.0
        %672 = vmatpush1.msra.mxu0 0.0
        %673 = vmatprep.subr.mxu0 0.0
        %674 = vmatpush1.msra.mxu0 0.0
        %675 = vmatprep.subr.mxu0 0.0
        %676 = vmatpush1.msra.mxu0 0.0
        %677 = vmatprep.subr.mxu0 0.0
        %678 = vmatpush1.msra.mxu0 0.0
        %679 = vmatprep.subr.mxu0 0.0
        %680 = vmatpush1.msra.mxu0 0.0
        %681 = vmatprep.subr.mxu0 0.0
        %682 = vmatpush1.msra.mxu0 0.0
        %683 = vmatprep.subr.mxu0 0.0
        %684 = vmatpush1.msra.mxu0 0.0
        %685 = vmatprep.subr.mxu0 0.0
        %686 = vmatpush1.msra.mxu0 0.0
        %687 = vmatprep.subr.mxu0 0.0
        %688 = vmatpush1.msra.mxu0 0.0
        %689 = vmatprep.subr.mxu0 0.0
        %690 = vmatpush1.msra.mxu0 0.0
        %691 = vmatprep.subr.mxu0 0.0
        %692 = vmatpush1.msra.mxu0 0.0
        %693 = vmatprep.subr.mxu0 0.0
        %694 = vmatpush1.msra.mxu0 0.0
        %695 = vmatprep.subr.mxu0 0.0
        %696 = vmatpush1.msra.mxu0 0.0
        %697 = vmatprep.subr.mxu0 0.0
        %698 = vmatpush1.msra.mxu0 0.0
        %699 = vmatprep.subr.mxu0 0.0
        %700 = vmatpush1.msra.mxu0 0.0
        %701 = vmatprep.mubr.f32.mxu0 0.0
        %702 = vmatmul.mubr.f32.gmra.mrb[0].mxu0 %v626
        %v703 = vpop.f32.mrb[0].mxu0
        %v704 = vadd.f32 %v597, %v703
        %v705 = vpop.f32.mrb[0].mxu0
        %706 = vmatprep.mubr.f32.mxu0 0.0
        %707 = vmatmul.mubr.f32.gmra.mrb[0].mxu0 %v629
        %v708 = vpop.f32.mrb[0].mxu0
        %v709 = vadd.f32 %v602, %v708
        %v710 = vpop.f32.mrb[0].mxu0
        %711 = vmatprep.mubr.f32.mxu0 0.0
        %712 = vmatmul.mubr.f32.gmra.mrb[0].mxu0 %v632
        %v713 = vpop.f32.mrb[0].mxu0
        %v714 = vadd.f32 %v607, %v713
        %v715 = vpop.f32.mrb[0].mxu0
        %716 = vmatprep.mubr.f32.mxu0 0.0
        %717 = vmatmul.mubr.f32.gmra.mrb[0].mxu0 %v635
        %v718 = vpop.f32.mrb[0].mxu0
        %v719 = vadd.f32 %v612, %v718
        %v720 = vpop.f32.mrb[0].mxu0
        %721 = vdwg.mxu0
        %723 = vset.pattern.permute.xlu0 0
        %724 = vperm.xlu0 %723, %v615
        %v725 = vpop.permute.xlu0 %724
        %728 = vset.pattern.permute.xlu0 0
        %729 = vperm.xlu0 %728, %v616
        %v730 = vpop.permute.xlu0 %729
        %733 = vset.pattern.permute.xlu0 0
        %734 = vperm.xlu0 %733, %v617
        %v735 = vpop.permute.xlu0 %734
        %738 = vset.pattern.permute.xlu0 0
        %739 = vperm.xlu0 %738, %v618
        %v740 = vpop.permute.xlu0 %739
        %v742 = vadd.f32 %v704, %v725
        %v743 = vadd.f32 %v709, %v730
        %v744 = vadd.f32 %v714, %v735
        %v745 = vadd.f32 %v719, %v740
        %v746 = vmax.f32 %v742, 0.0
        %v747 = vmax.f32 %v743, 0.0
        %v748 = vmax.f32 %v744, 0.0
        %v749 = vmax.f32 %v745, 0.0
        %v750 = vmax.f32 %v407, 0.0
        %v751 = vld [vmem:[%s4] sm:$0xff]
        %v752 = vld [vmem:[%s4 + $0x8] sm:$0xff]
        %v753 = vld [vmem:[%s5] sm:$0xff]
        %v754 = vld [vmem:[%s5 + $0x8] sm:$0xff]
        %v756 = vsel %vm624, %v753, 0
        %v759 = vsel %vm624, %v754, 0
        %761 = vmatprep.subr.mxu0 0.0
        %762 = vmatpush1.msra.mxu0 %v746
        %763 = vmatprep.subr.mxu0 0.0
        %764 = vmatpush1.msra.mxu0 %v747
        %765 = vmatprep.subr.mxu0 0.0
        %766 = vmatpush1.msra.mxu0 %v748
        %767 = vmatprep.subr.mxu0 0.0
        %768 = vmatpush1.msra.mxu0 %v749
        %769 = vmatprep.subr.mxu0 0.0
        %770 = vmatpush1.msra.mxu0 0.0
        %771 = vmatprep.subr.mxu0 0.0
        %772 = vmatpush1.msra.mxu0 0.0
        %773 = vmatprep.subr.mxu0 0.0
        %774 = vmatpush1.msra.mxu0 0.0
        %775 = vmatprep.subr.mxu0 0.0
        %776 = vmatpush1.msra.mxu0 0.0
        %777 = vmatprep.subr.mxu0 0.0
        %778 = vmatpush1.msra.mxu0 0.0
        %779 = vmatprep.subr.mxu0 0.0
        %780 = vmatpush1.msra.mxu0 0.0
        %781 = vmatprep.subr.mxu0 0.0
        %782 = vmatpush1.msra.mxu0 0.0
        %783 = vmatprep.subr.mxu0 0.0
        %784 = vmatpush1.msra.mxu0 0.0
        %785 = vmatprep.subr.mxu0 0.0
        %786 = vmatpush1.msra.mxu0 0.0
        %787 = vmatprep.subr.mxu0 0.0
        %788 = vmatpush1.msra.mxu0 0.0
        %789 = vmatprep.subr.mxu0 0.0
        %790 = vmatpush1.msra.mxu0 0.0
        %791 = vmatprep.subr.mxu0 0.0
        %792 = vmatpush1.msra.mxu0 0.0
        %793 = vmatprep.subr.mxu0 0.0
        %794 = vmatpush1.msra.mxu0 0.0
        %795 = vmatprep.subr.mxu0 0.0
        %796 = vmatpush1.msra.mxu0 0.0
        %797 = vmatprep.subr.mxu0 0.0
        %798 = vmatpush1.msra.mxu0 0.0
        %799 = vmatprep.subr.mxu0 0.0
        %800 = vmatpush1.msra.mxu0 0.0
        %801 = vmatprep.subr.mxu0 0.0
        %802 = vmatpush1.msra.mxu0 0.0
        %803 = vmatprep.subr.mxu0 0.0
        %804 = vmatpush1.msra.mxu0 0.0
        %805 = vmatprep.subr.mxu0 0.0
        %806 = vmatpush1.msra.mxu0 0.0
        %807 = vmatprep.subr.mxu0 0.0
        %808 = vmatpush1.msra.mxu0 0.0
        %809 = vmatprep.subr.mxu0 0.0
        %810 = vmatpush1.msra.mxu0 0.0
        %811 = vmatprep.subr.mxu0 0.0
        %812 = vmatpush1.msra.mxu0 0.0
        %813 = vmatprep.subr.mxu0 0.0
        %814 = vmatpush1.msra.mxu0 0.0
        %815 = vmatprep.subr.mxu0 0.0
        %816 = vmatpush1.msra.mxu0 0.0
        %817 = vmatprep.subr.mxu0 0.0
        %818 = vmatpush1.msra.mxu0 0.0
        %819 = vmatprep.subr.mxu0 0.0
        %820 = vmatpush1.msra.mxu0 0.0
        %821 = vmatprep.subr.mxu0 0.0
        %822 = vmatpush1.msra.mxu0 0.0
        %823 = vmatprep.subr.mxu0 0.0
        %824 = vmatpush1.msra.mxu0 0.0
        %825 = vmatprep.mubr.f32.mxu0 0.0
        %826 = vmatmul.mubr.f32.gmra.mrb[0].mxu0 %v756
        %v827 = vpop.f32.mrb[0].mxu0
        %v828 = vadd.f32 0.0, %v827
        %v829 = vpop.f32.mrb[0].mxu0
        %830 = vmatprep.mubr.f32.mxu0 0.0
        %831 = vmatmul.mubr.f32.gmra.mrb[0].mxu0 %v759
        %v832 = vpop.f32.mrb[0].mxu0
        %v833 = vadd.f32 0.0, %v832
        %v834 = vpop.f32.mrb[0].mxu0
        %835 = vdwg.mxu0
        %vm836 = vcmask 64512
        %v838 = vsel %vm836, %v751, 0
        %v841 = vsel %vm836, %v752, 0
        %843 = vmatprep.subr.mxu0 0.0
        %844 = vmatpush1.msra.mxu0 %v750
        %845 = vmatprep.subr.mxu0 0.0
        %846 = vmatpush1.msra.mxu0 0.0
        %847 = vmatprep.subr.mxu0 0.0
        %848 = vmatpush1.msra.mxu0 0.0
        %849 = vmatprep.subr.mxu0 0.0
        %850 = vmatpush1.msra.mxu0 0.0
        %851 = vmatprep.subr.mxu0 0.0
        %852 = vmatpush1.msra.mxu0 0.0
        %853 = vmatprep.subr.mxu0 0.0
        %854 = vmatpush1.msra.mxu0 0.0
        %855 = vmatprep.subr.mxu0 0.0
        %856 = vmatpush1.msra.mxu0 0.0
        %857 = vmatprep.subr.mxu0 0.0
        %858 = vmatpush1.msra.mxu0 0.0
        %859 = vmatprep.subr.mxu0 0.0
        %860 = vmatpush1.msra.mxu0 0.0
        %861 = vmatprep.subr.mxu0 0.0
        %862 = vmatpush1.msra.mxu0 0.0
        %863 = vmatprep.subr.mxu0 0.0
        %864 = vmatpush1.msra.mxu0 0.0
        %865 = vmatprep.subr.mxu0 0.0
        %866 = vmatpush1.msra.mxu0 0.0
        %867 = vmatprep.subr.mxu0 0.0
        %868 = vmatpush1.msra.mxu0 0.0
        %869 = vmatprep.subr.mxu0 0.0
        %870 = vmatpush1.msra.mxu0 0.0
        %871 = vmatprep.subr.mxu0 0.0
        %872 = vmatpush1.msra.mxu0 0.0
        %873 = vmatprep.subr.mxu0 0.0
        %874 = vmatpush1.msra.mxu0 0.0
        %875 = vmatprep.subr.mxu0 0.0
        %876 = vmatpush1.msra.mxu0 0.0
        %877 = vmatprep.subr.mxu0 0.0
        %878 = vmatpush1.msra.mxu0 0.0
        %879 = vmatprep.subr.mxu0 0.0
        %880 = vmatpush1.msra.mxu0 0.0
        %881 = vmatprep.subr.mxu0 0.0
        %882 = vmatpush1.msra.mxu0 0.0
        %883 = vmatprep.subr.mxu0 0.0
        %884 = vmatpush1.msra.mxu0 0.0
        %885 = vmatprep.subr.mxu0 0.0
        %886 = vmatpush1.msra.mxu0 0.0
        %887 = vmatprep.subr.mxu0 0.0
        %888 = vmatpush1.msra.mxu0 0.0
        %889 = vmatprep.subr.mxu0 0.0
        %890 = vmatpush1.msra.mxu0 0.0
        %891 = vmatprep.subr.mxu0 0.0
        %892 = vmatpush1.msra.mxu0 0.0
        %893 = vmatprep.subr.mxu0 0.0
        %894 = vmatpush1.msra.mxu0 0.0
        %895 = vmatprep.subr.mxu0 0.0
        %896 = vmatpush1.msra.mxu0 0.0
        %897 = vmatprep.subr.mxu0 0.0
        %898 = vmatpush1.msra.mxu0 0.0
        %899 = vmatprep.subr.mxu0 0.0
        %900 = vmatpush1.msra.mxu0 0.0
        %901 = vmatprep.subr.mxu0 0.0
        %902 = vmatpush1.msra.mxu0 0.0
        %903 = vmatprep.subr.mxu0 0.0
        %904 = vmatpush1.msra.mxu0 0.0
        %905 = vmatprep.subr.mxu0 0.0
        %906 = vmatpush1.msra.mxu0 0.0
        %907 = vmatprep.mubr.f32.mxu0 0.0
        %908 = vmatmul.mubr.f32.gmra.mrb[0].mxu0 %v838
        %v909 = vpop.f32.mrb[0].mxu0
        %v910 = vadd.f32 %v828, %v909
        %v911 = vpop.f32.mrb[0].mxu0
        %912 = vmatprep.mubr.f32.mxu0 0.0
        %913 = vmatmul.mubr.f32.gmra.mrb[0].mxu0 %v841
        %v914 = vpop.f32.mrb[0].mxu0
        %v915 = vadd.f32 %v833, %v914
        %v916 = vpop.f32.mrb[0].mxu0
        %917 = vdwg.mxu0
        %919 = vset.pattern.permute.xlu0 0
        %920 = vperm.xlu0 %919, %v619
        %v921 = vpop.permute.xlu0 %920
        %924 = vset.pattern.permute.xlu0 0
        %925 = vperm.xlu0 %924, %v620
        %v926 = vpop.permute.xlu0 %925
        %v928 = vadd.f32 %v910, %v921
        %v929 = vadd.f32 %v915, %v926
        %v930 = vmax.f32 %v928, 0.0
        %v931 = vmax.f32 %v929, 0.0
        %v932 = vld [vmem:[%s6] sm:$0xff]
        %934 = vset.pattern.permute.xlu0 0
        %935 = vperm.xlu0 %934, %v621
        %v936 = vpop.permute.xlu0 %935
        %vm938 = vcmask 130048
        %v940 = vsel %vm938, %v932, 0
        %942 = vmatprep.subr.mxu0 0.0
        %943 = vmatpush1.msra.mxu0 %v930
        %944 = vmatprep.subr.mxu0 0.0
        %945 = vmatpush1.msra.mxu0 %v931
        %946 = vmatprep.subr.mxu0 0.0
        %947 = vmatpush1.msra.mxu0 0.0
        %948 = vmatprep.subr.mxu0 0.0
        %949 = vmatpush1.msra.mxu0 0.0
        %950 = vmatprep.subr.mxu0 0.0
        %951 = vmatpush1.msra.mxu0 0.0
        %952 = vmatprep.subr.mxu0 0.0
        %953 = vmatpush1.msra.mxu0 0.0
        %954 = vmatprep.subr.mxu0 0.0
        %955 = vmatpush1.msra.mxu0 0.0
        %956 = vmatprep.subr.mxu0 0.0
        %957 = vmatpush1.msra.mxu0 0.0
        %958 = vmatprep.subr.mxu0 0.0
        %959 = vmatpush1.msra.mxu0 0.0
        %960 = vmatprep.subr.mxu0 0.0
        %961 = vmatpush1.msra.mxu0 0.0
        %962 = vmatprep.subr.mxu0 0.0
        %963 = vmatpush1.msra.mxu0 0.0
        %964 = vmatprep.subr.mxu0 0.0
        %965 = vmatpush1.msra.mxu0 0.0
        %966 = vmatprep.subr.mxu0 0.0
        %967 = vmatpush1.msra.mxu0 0.0
        %968 = vmatprep.subr.mxu0 0.0
        %969 = vmatpush1.msra.mxu0 0.0
        %970 = vmatprep.subr.mxu0 0.0
        %971 = vmatpush1.msra.mxu0 0.0
        %972 = vmatprep.subr.mxu0 0.0
        %973 = vmatpush1.msra.mxu0 0.0
        %974 = vmatprep.subr.mxu0 0.0
        %975 = vmatpush1.msra.mxu0 0.0
        %976 = vmatprep.subr.mxu0 0.0
        %977 = vmatpush1.msra.mxu0 0.0
        %978 = vmatprep.subr.mxu0 0.0
        %979 = vmatpush1.msra.mxu0 0.0
        %980 = vmatprep.subr.mxu0 0.0
        %981 = vmatpush1.msra.mxu0 0.0
        %982 = vmatprep.subr.mxu0 0.0
        %983 = vmatpush1.msra.mxu0 0.0
        %984 = vmatprep.subr.mxu0 0.0
        %985 = vmatpush1.msra.mxu0 0.0
        %986 = vmatprep.subr.mxu0 0.0
        %987 = vmatpush1.msra.mxu0 0.0
        %988 = vmatprep.subr.mxu0 0.0
        %989 = vmatpush1.msra.mxu0 0.0
        %990 = vmatprep.subr.mxu0 0.0
        %991 = vmatpush1.msra.mxu0 0.0
        %992 = vmatprep.subr.mxu0 0.0
        %993 = vmatpush1.msra.mxu0 0.0
        %994 = vmatprep.subr.mxu0 0.0
        %995 = vmatpush1.msra.mxu0 0.0
        %996 = vmatprep.subr.mxu0 0.0
        %997 = vmatpush1.msra.mxu0 0.0
        %998 = vmatprep.subr.mxu0 0.0
        %999 = vmatpush1.msra.mxu0 0.0
        %1000 = vmatprep.subr.mxu0 0.0
        %1001 = vmatpush1.msra.mxu0 0.0
        %1002 = vmatprep.subr.mxu0 0.0
        %1003 = vmatpush1.msra.mxu0 0.0
        %1004 = vmatprep.subr.mxu0 0.0
        %1005 = vmatpush1.msra.mxu0 0.0
        %1006 = vmatprep.mubr.f32.mxu0 0.0
        %1007 = vmatmul.mubr.f32.gmra.mrb[0].mxu0 %v940
        %v1008 = vpop.f32.mrb[0].mxu0
        %v1009 = vadd.f32 %v936, %v1008
        %v1010 = vpop.f32.mrb[0].mxu0
        %1011 = vdwg.mxu0
        %v1012 = vmax.f32 %v1009, 0.0
        %1014 = vset.pattern.permute.xlu0 0
        %1015 = vperm.xlu0 %1014, %v622
        %v1016 = vpop.permute.xlu0 %1015
        %v1018 = vmul.f32 %v1016, %v1012
        %v1019 = vrot.slane %v1018, 4
        %v1020 = vadd.f32 %v1018, %v1019
        %v1021 = vrot.slane %v1020, 2
        %v1022 = vadd.f32 %v1020, %v1021
        %v1023 = vrot.slane %v1022, 1
        %v1024 = vadd.f32 %v1022, %v1023
        %1026 = vset.pattern.permute.xlu0 0
        %1027 = vperm.xlu0 %1026, %v623
        %v1028 = vpop.permute.xlu0 %1027
        %v1030 = vadd.f32 %v1024, %v1028
        %v1031 = vsub.f32 0.0, %v1030
        %v1032 = vmul.f32 %v1031, 1.442695
        %v1033 = vpow.pop %v1032
        %v1034 = vadd.f32 %v1033, 1.0
        %v1035 = vrcp.pop %v1034
        %1036 = vst [vmem:[%s314] sm:$0x1] %v1035
        %s1037 = sand.u32 %s208, 1
        %s1038 = scalar_lea.sflag [#allocation4], %s1037
        %s1039 = sand.u32 %s208, 1
        %s1040 = scalar_lea.vmem [#allocation3], %s1039
        // Predicated region
        $region53: #{tpu_custom_call.1} parent=51 // pred_check
          %p1041 = pneg %p218
        $region54: #{tpu_custom_call.1} parent=51 // pred_check_branch
          %1043 = sbr.rel (%p1041) target = $region56
        $region55: #{tpu_custom_call.1} parent=51 // pred_region
          %s1045 = ssub.s32 16, 16
          %1046 = vsyncadd %s1038, %s1045
          %s1047 = smul.addr %s22, 16
          %s1048 = scalar_lea.hbm %s8, %s1047
          %s1050 = sshll.u32 %s1040, 4
          %s1051 = int_to_ptr.vmem [resolvable:$true] %s1050
          %1053 = dma.vmem_to_hbm [thread:$0]  %s1051, 16, %s1048, %s1038
        $region56: #{tpu_custom_call.1} parent=51 // pred_fallthru
          _
      $region52: #{tpu_custom_call.1} parent=5 // pred_fallthru
        _
      %p1054 = scmp.le.s32.totalorder 2, %s17
      // Predicated region
      $region57: #{tpu_custom_call.1} parent=5 // pred_check
        %p1055 = pneg %p1054
      $region58: #{tpu_custom_call.1} parent=5 // pred_check_branch
        %1057 = sbr.rel (%p1055) target = $region60
      $region59: #{tpu_custom_call.1} parent=5 // pred_region
        %s1058 = ssub.s32 %s17, 2
        // Predicated region
        $region61: #{tpu_custom_call.1} parent=59 // pred_check
          %p1059 = pneg %p224
        $region62: #{tpu_custom_call.1} parent=59 // pred_check_branch
          %1061 = sbr.rel (%p1059) target = $region64
        $region63: #{tpu_custom_call.1} parent=59 // pred_region
          %s1062 = sand.u32 %s209, 1
          %s1063 = scalar_lea.sflag [#allocation4], %s1062
          %s1064 = sand.u32 %s209, 1
          %s1065 = scalar_lea.vmem [#allocation3], %s1064
          %1066 = dma.done %s1063, 16
        $region64: #{tpu_custom_call.1} parent=59 // pred_fallthru
          _
      $region60: #{tpu_custom_call.1} parent=5 // pred_fallthru
        _
    $region6: #{tpu_custom_call.1} parent=1 // loop_footer
      %s21 = sadd.s32 1, %s17
    $region7: #{tpu_custom_call.1} parent=1 // loop_footer_branch
      %16 = sbr.rel target = $region3
    $region8: #{tpu_custom_call.1} parent=1 // loop_exit
      _
    %1067 = vsyncpa [#allocation4], 1
    %s1068 = scalar_lea.sflag [#allocation4], 1
    %1069 = vsyncpa %s1068, 1

</llo_original>
